<compile_context>
chip_gen: v7x
topology: tpu7x:2x2x1
jax: 0.10.0
libtpu: 0.0.40
codegen_flags: <defaults>
</compile_context>

<pallas_src>
import functools

import jax
import jax.numpy as jnp
import numpy as np
from jax.experimental import pallas as pl
from jax.experimental.pallas import tpu as pltpu

EPS = 1e-5
LANE = 128
SUBLANE = 8


def _round_up(x, m):
    return ((x + m - 1) // m) * m


@functools.lru_cache(maxsize=None)
def _roll_matches_numpy() -> bool:
    """One-time eager probe: does pltpu.roll follow the jnp.roll/np.roll convention
    (y[i] = x[i - shift]) or the opposite rotate convention?  Keeps the conv tap
    shifts correct across rotate-convention differences between jax versions."""

    def probe(x_ref, o_ref):
        o_ref[...] = pltpu.roll(x_ref[...], shift=1, axis=0)

    x = jnp.arange(SUBLANE * LANE, dtype=jnp.float32).reshape(SUBLANE, LANE)
    y = pl.pallas_call(
        probe, out_shape=jax.ShapeDtypeStruct((SUBLANE, LANE), jnp.float32))(x)
    return bool(jnp.all(y[1, :] == x[0, :]))


def resnet_block_kernel(pos_ref, x_ref, w1_ref, w2_ref, w3_ref, ws_ref,
                        gamma_ref, beta_ref, out_ref, *,
                        seq_len, nl_valid, roll_like_numpy):
    """Fused block.  Activations are (NLp, C): batch folded onto the sublane axis,
    channels (zero-padded to a multiple of 128) on the lane axis."""
    NLp = x_ref.shape[0]
    L = seq_len
    pos = pos_ref[...]                     # (NLp, 1) int32: row position inside its sequence

    if NLp == nl_valid:
        row_mask = None                    # no sublane-padding rows
    else:                                  # exclude padding rows from batch statistics
        row_mask = jax.lax.broadcasted_iota(jnp.int32, (NLp, 1), 0) < nl_valid
    inv_count = 1.0 / float(nl_valid)

    def shift_rows(x, d):
        """y[r] = x[r + d], zeroed where r + d leaves the row's own sequence."""
        shift = ((-d) if roll_like_numpy else d) % NLp
        y = pltpu.roll(x, shift=shift, axis=0)          # XLU sublane rotate (no MXU work)
        valid = jnp.logical_and(pos + d >= 0, pos + d < L)
        return jnp.where(valid, y, 0.0)

    def conv_same(x, w_ref, K):
        """'same' Conv1d as a single im2col matmul: (NLp, K*Ci) @ (K*Ci, Co).
        Conv bias omitted: it is cancelled exactly by the following training-mode BN."""
        left = (K - 1) // 2                # PyTorch Conv1dSamePadding: len_pad//2 zeros left
        cols = [x if k == left else shift_rows(x, k - left) for k in range(K)]
        xcat = cols[0] if K == 1 else jnp.concatenate(cols, axis=1)
        return jnp.dot(xcat, w_ref[...], preferred_element_type=jnp.float32)

    def bn(h, i, relu):
        """Training-mode BatchNorm1d: single-pass biased batch stats over (N, L)."""
        gamma = gamma_ref[i:i + 1, :]
        beta = beta_ref[i:i + 1, :]
        hm = h if row_mask is None else jnp.where(row_mask, h, 0.0)
        mean = jnp.sum(hm, axis=0, keepdims=True) * inv_count
        ex2 = jnp.sum(hm * hm, axis=0, keepdims=True) * inv_count
        var = jnp.maximum(ex2 - mean * mean, 0.0)
        y = (h - mean) * jax.lax.rsqrt(var + EPS) * gamma + beta
        return jnp.maximum(y, 0.0) if relu else y

    x = x_ref[...]
    h = bn(conv_same(x, w1_ref, 8), 0, relu=True)
    h = bn(conv_same(h, w2_ref, 5), 1, relu=True)
    h = bn(conv_same(h, w3_ref, 3), 2, relu=False)
    s = bn(conv_same(x, ws_ref, 1), 3, relu=False)      # shortcut (in_ch != out_ch branch)
    out_ref[...] = jnp.maximum(h + s, 0.0)              # lane-dense, unmasked store


def resnet_baseline_block(x_ncl, params):
    """x_ncl: (N, C_in, L) float32, PyTorch layout.  Returns (N, C_out, L)."""
    # Conv biases are accepted but unused: training-mode BN cancels them exactly.
    w1, w2, w3, ws, _biases, gammas, betas = params
    N, Cin, L = x_ncl.shape
    Co = w1.shape[2]

    Cip = _round_up(Cin, LANE)        # lane-pad input channels
    Cop = _round_up(Co, LANE)         # lane-pad output channels (lane-dense stores)
    NL = N * L
    NLp = _round_up(NL, SUBLANE)      # sublane-pad the folded batch*length axis

    # activations: NCL -> (N*L, Cin) -> zero-pad to (NLp, Cip)
    x_rows = jnp.transpose(x_ncl, (0, 2, 1)).astype(jnp.float32).reshape(NL, Cin)
    x_pad = jnp.zeros((NLp, Cip), jnp.float32).at[:NL, :Cin].set(x_rows)

    # im2col weights: (K, Ci, Co) -> channel-pad -> (K*Ci_pad, Co_pad)
    def prep_w(w, ci_pad):
        K, ci, co = w.shape
        wp = jnp.zeros((K, ci_pad, Cop), jnp.float32)
        wp = wp.at[:, :ci, :co].set(w.astype(jnp.float32))
        return wp.reshape(K * ci_pad, Cop)

    w1p = prep_w(w1, Cip)
    w2p = prep_w(w2, Cop)
    w3p = prep_w(w3, Cop)
    wsp = prep_w(ws, Cip)

    gp = jnp.zeros((4, Cop), jnp.float32).at[:, :Co].set(gammas.astype(jnp.float32))
    bp = jnp.zeros((4, Cop), jnp.float32).at[:, :Co].set(betas.astype(jnp.float32))

    # per-row position inside its sequence (precomputed: no vector int-div in kernel)
    pos = jnp.asarray((np.arange(NLp) % L).reshape(NLp, 1).astype(np.int32))

    kernel = functools.partial(
        resnet_block_kernel, seq_len=L, nl_valid=NL,
        roll_like_numpy=_roll_matches_numpy())

    vmem = pl.BlockSpec(memory_space=pltpu.MemorySpace.VMEM)
    out_pad = pl.pallas_call(
        kernel,
        out_shape=jax.ShapeDtypeStruct((NLp, Cop), jnp.float32),
        in_specs=[vmem] * 8,
        out_specs=vmem,
        compiler_params=pltpu.CompilerParams(vmem_limit_bytes=32 * 1024 * 1024),
    )(pos, x_pad, w1p, w2p, w3p, wsp, gp, bp)

    out = out_pad[:NL, :Co].reshape(N, L, Co)
    return jnp.transpose(out, (0, 2, 1))


# --------------------------- pure-JAX reference --------------------------- #
def _ref_forward(x_ncl, params):
    w1, w2, w3, ws, biases, gammas, betas = params

    def conv_same(x, w, b, K):
        left = (K - 1) // 2
        right = (K - 1) - left
        w_oik = jnp.transpose(w, (2, 1, 0))  # (Co, Ci, K)
        y = jax.lax.conv_general_dilated(
            x, w_oik, window_strides=(1,), padding=[(left, right)],
            dimension_numbers=('NCH', 'OIH', 'NCH'),
            precision=jax.lax.Precision.HIGHEST)
        return y + b[None, :, None]

    def bn(h, g, be):
        mean = jnp.mean(h, axis=(0, 2), keepdims=True)
        var = jnp.mean((h - mean) ** 2, axis=(0, 2), keepdims=True)
        return (h - mean) / jnp.sqrt(var + EPS) * g[None, :, None] + be[None, :, None]

    h = jax.nn.relu(bn(conv_same(x_ncl, w1, biases[0], 8), gammas[0], betas[0]))
    h = jax.nn.relu(bn(conv_same(h, w2, biases[1], 5), gammas[1], betas[1]))
    h = bn(conv_same(h, w3, biases[2], 3), gammas[2], betas[2])
    s = bn(conv_same(x_ncl, ws, biases[3], 1), gammas[3], betas[3])
    return jax.nn.relu(h + s)


if __name__ == "__main__":
    # Small demo shapes: batch=2, in_channels=4, out_channels=8, seq_len=16.
    N, Cin, Co, L = 2, 4, 8, 16

    key = jax.random.PRNGKey(0)
    k = jax.random.split(key, 8)
    w1 = 0.2 * jax.random.normal(k[0], (8, Cin, Co), jnp.float32)   # kernel_size=8
    w2 = 0.2 * jax.random.normal(k[1], (5, Co, Co), jnp.float32)    # kernel_size=5
    w3 = 0.2 * jax.random.normal(k[2], (3, Co, Co), jnp.float32)    # kernel_size=3
    ws = 0.2 * jax.random.normal(k[3], (1, Cin, Co), jnp.float32)   # shortcut 1x1 conv
    biases = 0.1 * jax.random.normal(k[4], (4, Co), jnp.float32)    # conv biases (cancel under BN)
    gammas = 1.0 + 0.1 * jax.random.normal(k[5], (4, Co), jnp.float32)  # BN weights
    betas = 0.1 * jax.random.normal(k[6], (4, Co), jnp.float32)         # BN biases
    params = (w1, w2, w3, ws, biases, gammas, betas)

    x = jax.random.normal(k[7], (N, Cin, L), jnp.float32)  # PyTorch NCL input

    out = jax.block_until_ready(resnet_baseline_block(x, params))
    ref = jax.block_until_ready(_ref_forward(x, params))

    np.testing.assert_allclose(np.asarray(out), np.asarray(ref), rtol=1e-3, atol=1e-3)
    assert out.shape == (N, Co, L) and out.dtype == jnp.float32

    print("KERNEL_OK")
</pallas_src>

<mosaic_0001>
module attributes {stable_mosaic.version = 11 : i64} {
  func.func @probe(%arg0: memref<8x128xf32, #tpu.memory_space<vmem>>, %arg1: memref<8x128xf32, #tpu.memory_space<vmem>>) attributes {dimension_semantics = [], scalar_prefetch = 0 : i64, scratch_operands = 0 : i64, tpu.core_type = #tpu.core_type<tc>} {
    %c0 = arith.constant 0 : index
    %c0_0 = arith.constant 0 : index
    %0 = vector.load %arg0[%c0, %c0_0] : memref<8x128xf32, #tpu.memory_space<vmem>>, vector<8x128xf32>
    %c1_i32 = arith.constant 1 : i32
    %1 = tpu.dynamic_rotate %0 by %c1_i32 dim 0 : vector<8x128xf32>, i32 -> vector<8x128xf32>
    %c0_1 = arith.constant 0 : index
    %c0_2 = arith.constant 0 : index
    %2 = vector.load %arg1[%c0_1, %c0_2] : memref<8x128xf32, #tpu.memory_space<vmem>>, vector<8x128xf32>
    tpu.vector_store %arg1[%c0_1, %c0_2], %1 {strides = array<i32>} : memref<8x128xf32, #tpu.memory_space<vmem>>, vector<8x128xf32>,
    return
  }
}

</mosaic_0001>

<llo_original>
// kernel: tpu_custom_call.1
$region0: #{tpu_custom_call.1}
  #allocation0 [shape = 'u32[]', space=smem, size = 0x4, offset = 0x4, fixed_abs, tag = 'smem constant byte address 0x4 - core index']
  #allocation1 [shape = 'u32[144,128]{1,0:T(1,128)}', space=vmem, size = 0x12000, scoped, tag = 'internal scratch']
  %s0 = inlined_call_operand.hbm [shape: f32[8,128], index: 0, kind: input, shape index: {}]
  %s1 = inlined_call_operand.hbm [shape: f32[8,128], index: 1, kind: output, shape index: {}]
  %s2 = sld [smem:[#allocation0]]
  $region18: #{tpu_custom_call.1} parent=0
    _
  %s4 = ssub.s32 1, %s2
  %s5 = scalar_select 0, %s4, %s2
  $region1: #{tpu_custom_call.1} parent=0
    #allocation2 [shape = 'u8[4096]{0}', space=vmem, size = 0x1000, scoped, tag = 'input window, operand 0, single buffered']
    #allocation3 [shape = 's32[1]{0}', space=sflag, size = 0x4, scoped, tag = 'scoped memory for tpu_custom_call.1']
    #allocation4 [shape = 's32[1]{0}', space=sflag, size = 0x4, scoped, tag = 'scoped memory for tpu_custom_call.1']
    #allocation5 [shape = 'u8[4096]{0}', space=vmem, size = 0x1000, scoped, tag = 'output window, operand 0, single buffered']
    %6 = vsyncpa [#allocation3], 0
    %7 = vsyncpa [#allocation4], 0
    // Predicated region
    $region2: #{tpu_custom_call.1} parent=1 // pred_check
      _
    $region3: #{tpu_custom_call.1} parent=1 // pred_check_branch
      %9 = sbr.rel (0) target = $region5
    $region4: #{tpu_custom_call.1} parent=1 // pred_region
      %s11 = ssub.s32 128, 128
      %12 = vsyncadd [#allocation3], %s11
      %s14 = sshll.u32 [#allocation2], 4
      %s15 = int_to_ptr.vmem [resolvable:$true] %s14
      %17 = dma.hbm_to_vmem [thread:$0]  %s0, 128, %s15, [#allocation3]
    $region5: #{tpu_custom_call.1} parent=1 // pred_fallthru
      _
    // Predicated region
    $region6: #{tpu_custom_call.1} parent=1 // pred_check
      _
    $region7: #{tpu_custom_call.1} parent=1 // pred_check_branch
      %19 = sbr.rel (0) target = $region9
    $region8: #{tpu_custom_call.1} parent=1 // pred_region
      %20 = dma.done [#allocation3], 128
    $region9: #{tpu_custom_call.1} parent=1 // pred_fallthru
      _
    %v21 = vld [vmem:[#allocation2] sm:$0xff]
    %v22 = vrot.slane %v21, 7
    %23 = vst [vmem:[#allocation5] sm:$0xff] %v22
    // Predicated region
    $region10: #{tpu_custom_call.1} parent=1 // pred_check
      _
    $region11: #{tpu_custom_call.1} parent=1 // pred_check_branch
      %25 = sbr.rel (0) target = $region13
    $region12: #{tpu_custom_call.1} parent=1 // pred_region
      %s27 = ssub.s32 128, 128
      %28 = vsyncadd [#allocation4], %s27
      %s30 = sshll.u32 [#allocation5], 4
      %s31 = int_to_ptr.vmem [resolvable:$true] %s30
      %33 = dma.vmem_to_hbm [thread:$0]  %s31, 128, %s1, [#allocation4]
    $region13: #{tpu_custom_call.1} parent=1 // pred_fallthru
      _
    // Predicated region
    $region14: #{tpu_custom_call.1} parent=1 // pred_check
      _
    $region15: #{tpu_custom_call.1} parent=1 // pred_check_branch
      %35 = sbr.rel (0) target = $region17
    $region16: #{tpu_custom_call.1} parent=1 // pred_region
      %36 = dma.done [#allocation4], 128
    $region17: #{tpu_custom_call.1} parent=1 // pred_fallthru
      _
    %37 = vsyncpa [#allocation3], 1
    %38 = vsyncpa [#allocation4], 1

</llo_original>
